<compile_context>
chip_gen: v6e
topology: v6e:2x2x1
jax: 0.10.0
libtpu: 0.0.40
codegen_flags: <defaults>
</compile_context>

<pallas_src>
import math

import numpy as np
import jax
import jax.numpy as jnp
from jax.experimental import pallas as pl
from jax.experimental.pallas import tpu as pltpu

MID_CH = 256     # self.mid_ch in the PyTorch module
EPS = 1e-6


# ===================================================================================
# Pallas kernel: one batch element per grid step, everything fused
# ===================================================================================
def _wpred_kernel(fea_ref, dm_ref, wc_ref, bc_ref, wfc_ref, bfc_ref, o_ref):
    # fea_ref: (1, HW, Cin)   dm_ref:  (1, 1, HW)
    # wc_ref:  (Cin, Cmid)    bc_ref:  (1, Cmid)
    # wfc_ref: (3, Cmid, O)   bfc_ref: (1, O)
    # o_ref:   (1, 1, O)
    fea = fea_ref[0]                                                     # (HW, Cin)

    # 1x1 conv == per-pixel linear
    x = jnp.dot(fea, wc_ref[...], preferred_element_type=jnp.float32) + bc_ref[...]

    # build the three normalized pooling weights from the downsampled mask
    dm = dm_ref[0]                                                       # (1, HW)
    fg = dm
    bg = 1.0 - dm
    full = fg + bg
    m_fg = jnp.sum(fg, axis=-1, keepdims=True)                           # (1, 1)
    m_bg = jnp.sum(bg, axis=-1, keepdims=True)
    m_full = jnp.sum(full, axis=-1, keepdims=True)
    w_fg = fg / (m_fg + EPS)
    w_bg = bg / (m_bg + EPS)
    w_full = full / (m_full + EPS)
    weights = jnp.concatenate([w_fg, w_bg, w_full], axis=0)              # (3, HW)

    # masked global poolings as a single matmul: (3, HW) @ (HW, Cmid) -> (3, Cmid)
    feats = jnp.dot(weights, x, preferred_element_type=jnp.float32)

    # fc over the concatenated (fg | bg | full) features: 3 row-blocks of the 768->O weight
    y = bfc_ref[...]                                                     # (1, O)
    for k in range(3):
        y = y + jnp.dot(feats[k:k + 1, :], wfc_ref[k],
                        preferred_element_type=jnp.float32)
    o_ref[0] = y


# ===================================================================================
# Bilinear resize (align_corners=True) -- tiny 1-channel glue, matrices precomputed
# ===================================================================================
def _interp_matrix_np(n_out, n_in):
    m = np.zeros((n_out, n_in), np.float32)
    for o in range(n_out):
        src = 0.0 if n_out == 1 else o * (n_in - 1) / (n_out - 1)
        lo = min(max(int(np.floor(src)), 0), n_in - 1)
        hi = min(lo + 1, n_in - 1)
        frac = src - lo
        m[o, lo] += 1.0 - frac
        m[o, hi] += frac
    return m


def _bilinear_resize_align_corners(mask, out_h, out_w):
    # TODO(synk): mask resize kept as plain-JAX glue (data-dependent-free index math on a
    # tiny (B,1,Hm,Wm) tensor); not worth a gather-style Pallas kernel.
    _, _, hm, wm = mask.shape
    rh = jnp.asarray(_interp_matrix_np(out_h, hm))
    rw = jnp.asarray(_interp_matrix_np(out_w, wm))
    return jnp.einsum("oi,bcij,pj->bcop", rh, mask, rw)


# ===================================================================================
# Wrapper
# ===================================================================================
def weight_predictor_forward(encoder_outputs, mask, params):
    """Matches Weight_predictor_issam.forward (fb=True). Returns (B, out_ch, 1, 1)."""
    fea = encoder_outputs[0]
    if fea.ndim == 3:                       # (L, B, D) -> (B, D, s, s), like the torch module
        L, bz, d = fea.shape
        s = int(math.isqrt(L))
        fea = jnp.transpose(fea, (1, 2, 0)).reshape(bz, d, s, s)
    B, Cin, Hf, Wf = fea.shape
    HW = Hf * Wf
    out_nc = params["wfc"].shape[-1]

    # NCHW -> (B, HW, Cin) so the 1x1 conv is a plain matmul inside the kernel
    fea_t = jnp.transpose(fea, (0, 2, 3, 1)).reshape(B, HW, Cin)

    # bilinear (align_corners=True) mask downsample to the feature resolution
    dm = _bilinear_resize_align_corners(mask.astype(jnp.float32), Hf, Wf)
    dm = dm.reshape(B, 1, HW)

    out = pl.pallas_call(
        _wpred_kernel,
        out_shape=jax.ShapeDtypeStruct((B, 1, out_nc), jnp.float32),
        grid=(B,),
        in_specs=[
            pl.BlockSpec((1, HW, Cin), lambda b: (b, 0, 0)),          # features
            pl.BlockSpec((1, 1, HW), lambda b: (b, 0, 0)),            # down-sampled mask
            pl.BlockSpec((Cin, MID_CH), lambda b: (0, 0)),            # conv weight (Cin, Cmid)
            pl.BlockSpec((1, MID_CH), lambda b: (0, 0)),              # conv bias
            pl.BlockSpec((3, MID_CH, out_nc), lambda b: (0, 0, 0)),   # fc weight (3, Cmid, O)
            pl.BlockSpec((1, out_nc), lambda b: (0, 0)),              # fc bias
        ],
        out_specs=pl.BlockSpec((1, 1, out_nc), lambda b: (b, 0, 0)),
        compiler_params=pltpu.CompilerParams(
            dimension_semantics=("parallel",)),                       # batch -> megacore on v7x
    )(fea_t, dm, params["wc"], params["bc"], params["wfc"], params["bfc"])

    return out.reshape(B, out_nc, 1, 1)


# ===================================================================================
# Deterministic parameters (shapes match the nn.Module, stored matmul-ready)
# ===================================================================================
def init_params(key, in_channels=256, out_channels=3):
    k1, k2, k3, k4 = jax.random.split(key, 4)
    s = 0.02
    return {
        # Conv2d(in_ch, 256, 1x1).weight is (256, in_ch, 1, 1) -> pre-transposed (in_ch, 256)
        "wc": (s * jax.random.normal(k1, (in_channels, MID_CH))).astype(jnp.float32),
        "bc": (s * jax.random.normal(k2, (1, MID_CH))).astype(jnp.float32),
        # Conv2d(3*256, out_ch, 1x1).weight is (out_ch, 768, 1, 1) -> stored (3, 256, out_ch)
        "wfc": (s * jax.random.normal(k3, (3, MID_CH, out_channels))).astype(jnp.float32),
        "bfc": (s * jax.random.normal(k4, (1, out_channels))).astype(jnp.float32),
    }


# ===================================================================================
# Pure-JAX reference (mirrors the PyTorch forward) for a correctness self-check
# ===================================================================================
def reference_forward(encoder_outputs, mask, params):
    fea = encoder_outputs[0]
    if fea.ndim == 3:
        L, bz, d = fea.shape
        s = int(math.isqrt(L))
        fea = jnp.transpose(fea, (1, 2, 0)).reshape(bz, d, s, s)
    B, Cin, Hf, Wf = fea.shape
    x = jnp.einsum("bchw,cm->bmhw", fea, params["wc"],
                   precision=jax.lax.Precision.HIGHEST) \
        + params["bc"].reshape(1, MID_CH, 1, 1)
    dm = _bilinear_resize_align_corners(mask.astype(jnp.float32), Hf, Wf)   # (B,1,Hf,Wf)
    fg, bg = dm, 1.0 - dm
    full = fg + bg

    def pooled(mk):
        m = jnp.sum(mk, axis=(2, 3), keepdims=True)
        return jnp.sum(x * mk / (m + EPS), axis=(2, 3))                     # (B, Cmid)

    feats = jnp.stack([pooled(fg), pooled(bg), pooled(full)], axis=1)       # (B, 3, Cmid)
    y = jnp.einsum("bkc,kco->bo", feats, params["wfc"],
                   precision=jax.lax.Precision.HIGHEST) + params["bfc"]
    return y.reshape(B, -1, 1, 1)


# ===================================================================================
if __name__ == "__main__":
    B, Cin, Hf, Wf = 2, 256, 8, 8          # small encoder feature map (in_channels=256)
    Hm, Wm = 32, 32                        # full-resolution mask, 1 channel
    key = jax.random.PRNGKey(0)
    kf, km, kp = jax.random.split(key, 3)
    fea = jax.random.normal(kf, (B, Cin, Hf, Wf), jnp.float32)
    mask = jax.random.uniform(km, (B, 1, Hm, Wm), jnp.float32)
    params = init_params(kp, in_channels=Cin, out_channels=3)

    out = weight_predictor_forward([fea], mask, params)
    out = jax.block_until_ready(out)

    assert out.shape == (B, 3, 1, 1), out.shape
    assert bool(jnp.all(jnp.isfinite(out)))

    ref = reference_forward([fea], mask, params)
    assert bool(jnp.allclose(out, ref, rtol=5e-2, atol=5e-3)), \
        float(jnp.max(jnp.abs(out - ref)))
    print("KERNEL_OK")
</pallas_src>

<mosaic_0001>
module attributes {stable_mosaic.version = 11 : i64} {
  func.func @_wpred_kernel(%arg0: i32, %arg1: memref<1x64x256xf32, #tpu.memory_space<vmem>>, %arg2: memref<1x1x64xf32, #tpu.memory_space<vmem>>, %arg3: memref<256x256xf32, #tpu.memory_space<vmem>>, %arg4: memref<1x256xf32, #tpu.memory_space<vmem>>, %arg5: memref<3x256x3xf32, #tpu.memory_space<vmem>>, %arg6: memref<1x3xf32, #tpu.memory_space<vmem>>, %arg7: memref<1x1x3xf32, #tpu.memory_space<vmem>>) attributes {dimension_semantics = [#tpu.dimension_semantics<parallel>], iteration_bounds = array<i64: 2>, scalar_prefetch = 0 : i64, scratch_operands = 0 : i64, tpu.core_type = #tpu.core_type<tc>, window_params = [{transform_indices = @transform_0, window_bounds = array<i64: 1, 64, 256>}, {transform_indices = @transform_1, window_bounds = array<i64: 1, 1, 64>}, {pipeline_mode = #tpu.pipeline_mode<synchronous>, transform_indices = @transform_2, window_bounds = array<i64: 256, 256>}, {pipeline_mode = #tpu.pipeline_mode<synchronous>, transform_indices = @transform_3, window_bounds = array<i64: 1, 256>}, {pipeline_mode = #tpu.pipeline_mode<synchronous>, transform_indices = @transform_4, window_bounds = array<i64: 3, 256, 3>}, {pipeline_mode = #tpu.pipeline_mode<synchronous>, transform_indices = @transform_5, window_bounds = array<i64: 1, 3>}, {transform_indices = @transform_6, window_bounds = array<i64: 1, 1, 3>}]} {
    %c0 = arith.constant 0 : index
    %c0_0 = arith.constant 0 : index
    %c0_1 = arith.constant 0 : index
    %0 = vector.load %arg1[%c0, %c0_0, %c0_1] : memref<1x64x256xf32, #tpu.memory_space<vmem>>, vector<1x64x256xf32>
    %1 = vector.shape_cast %0 : vector<1x64x256xf32> to vector<64x256xf32>
    %c0_2 = arith.constant 0 : index
    %c0_3 = arith.constant 0 : index
    %2 = vector.load %arg3[%c0_2, %c0_3] : memref<256x256xf32, #tpu.memory_space<vmem>>, vector<256x256xf32>
    %cst = arith.constant dense<0.000000e+00> : vector<64x256xf32>
    %3 = tpu.matmul %1, %2, %cst {dimension_numbers = #tpu.dot_dimension_numbers<[1], [0], [0], [1], [0, 0, 1, 1], [], []>} : vector<64x256xf32>, vector<256x256xf32>, vector<64x256xf32> -> vector<64x256xf32>
    %c0_4 = arith.constant 0 : index
    %c0_5 = arith.constant 0 : index
    %4 = vector.load %arg4[%c0_4, %c0_5] : memref<1x256xf32, #tpu.memory_space<vmem>>, vector<1x256xf32>
    %5 = vector.broadcast %4 : vector<1x256xf32> to vector<64x256xf32>
    %6 = arith.addf %3, %5 : vector<64x256xf32>
    %c0_6 = arith.constant 0 : index
    %c0_7 = arith.constant 0 : index
    %c0_8 = arith.constant 0 : index
    %7 = vector.load %arg2[%c0_6, %c0_7, %c0_8] : memref<1x1x64xf32, #tpu.memory_space<vmem>>, vector<1x1x64xf32>
    %8 = vector.shape_cast %7 : vector<1x1x64xf32> to vector<1x64xf32>
    %cst_9 = arith.constant 1.000000e+00 : f32
    %9 = vector.broadcast %cst_9 : f32 to vector<1x64xf32>
    %10 = arith.subf %9, %8 : vector<1x64xf32>
    %11 = arith.addf %8, %10 : vector<1x64xf32>
    %cst_10 = arith.constant dense<0.000000e+00> : vector<1xf32>
    %12 = vector.multi_reduction <add>, %8, %cst_10 [1] : vector<1x64xf32> to vector<1xf32>
    %13 = vector.shape_cast %12 : vector<1xf32> to vector<1x1xf32>
    %cst_11 = arith.constant dense<0.000000e+00> : vector<1xf32>
    %14 = vector.multi_reduction <add>, %10, %cst_11 [1] : vector<1x64xf32> to vector<1xf32>
    %15 = vector.shape_cast %14 : vector<1xf32> to vector<1x1xf32>
    %cst_12 = arith.constant dense<0.000000e+00> : vector<1xf32>
    %16 = vector.multi_reduction <add>, %11, %cst_12 [1] : vector<1x64xf32> to vector<1xf32>
    %17 = vector.shape_cast %16 : vector<1xf32> to vector<1x1xf32>
    %cst_13 = arith.constant 9.99999997E-7 : f32
    %18 = vector.broadcast %cst_13 : f32 to vector<1x1xf32>
    %19 = arith.addf %13, %18 : vector<1x1xf32>
    %20 = vector.broadcast %19 : vector<1x1xf32> to vector<1x64xf32>
    %21 = arith.divf %8, %20 : vector<1x64xf32>
    %cst_14 = arith.constant 9.99999997E-7 : f32
    %22 = vector.broadcast %cst_14 : f32 to vector<1x1xf32>
    %23 = arith.addf %15, %22 : vector<1x1xf32>
    %24 = vector.broadcast %23 : vector<1x1xf32> to vector<1x64xf32>
    %25 = arith.divf %10, %24 : vector<1x64xf32>
    %cst_15 = arith.constant 9.99999997E-7 : f32
    %26 = vector.broadcast %cst_15 : f32 to vector<1x1xf32>
    %27 = arith.addf %17, %26 : vector<1x1xf32>
    %28 = vector.broadcast %27 : vector<1x1xf32> to vector<1x64xf32>
    %29 = arith.divf %11, %28 : vector<1x64xf32>
    %30 = tpu.concatenate %21, %25, %29 in 0 : vector<1x64xf32>, vector<1x64xf32>, vector<1x64xf32> -> vector<3x64xf32>
    %cst_16 = arith.constant dense<0.000000e+00> : vector<3x256xf32>
    %31 = tpu.matmul %30, %6, %cst_16 {dimension_numbers = #tpu.dot_dimension_numbers<[1], [0], [0], [1], [0, 0, 1, 1], [], []>} : vector<3x64xf32>, vector<64x256xf32>, vector<3x256xf32> -> vector<3x256xf32>
    %c0_17 = arith.constant 0 : index
    %c0_18 = arith.constant 0 : index
    %32 = vector.load %arg6[%c0_17, %c0_18] : memref<1x3xf32, #tpu.memory_space<vmem>>, vector<1x3xf32>
    %33 = vector.extract_strided_slice %31 {offsets = [0, 0], sizes = [1, 256], strides = [1, 1]} : vector<3x256xf32> to vector<1x256xf32>
    %c0_19 = arith.constant 0 : index
    %c0_20 = arith.constant 0 : index
    %c0_21 = arith.constant 0 : index
    %34 = vector.load %arg5[%c0_19, %c0_20, %c0_21] : memref<3x256x3xf32, #tpu.memory_space<vmem>>, vector<1x256x3xf32>
    %35 = vector.shape_cast %34 : vector<1x256x3xf32> to vector<256x3xf32>
    %cst_22 = arith.constant dense<0.000000e+00> : vector<1x3xf32>
    %36 = tpu.matmul %33, %35, %cst_22 {dimension_numbers = #tpu.dot_dimension_numbers<[1], [0], [0], [1], [0, 0, 1, 1], [], []>} : vector<1x256xf32>, vector<256x3xf32>, vector<1x3xf32> -> vector<1x3xf32>
    %37 = arith.addf %32, %36 : vector<1x3xf32>
    %38 = vector.extract_strided_slice %31 {offsets = [1, 0], sizes = [1, 256], strides = [1, 1]} : vector<3x256xf32> to vector<1x256xf32>
    %c1 = arith.constant 1 : index
    %c0_23 = arith.constant 0 : index
    %c0_24 = arith.constant 0 : index
    %39 = vector.load %arg5[%c1, %c0_23, %c0_24] : memref<3x256x3xf32, #tpu.memory_space<vmem>>, vector<1x256x3xf32>
    %40 = vector.shape_cast %39 : vector<1x256x3xf32> to vector<256x3xf32>
    %cst_25 = arith.constant dense<0.000000e+00> : vector<1x3xf32>
    %41 = tpu.matmul %38, %40, %cst_25 {dimension_numbers = #tpu.dot_dimension_numbers<[1], [0], [0], [1], [0, 0, 1, 1], [], []>} : vector<1x256xf32>, vector<256x3xf32>, vector<1x3xf32> -> vector<1x3xf32>
    %42 = arith.addf %37, %41 : vector<1x3xf32>
    %43 = vector.extract_strided_slice %31 {offsets = [2, 0], sizes = [1, 256], strides = [1, 1]} : vector<3x256xf32> to vector<1x256xf32>
    %c2 = arith.constant 2 : index
    %c0_26 = arith.constant 0 : index
    %c0_27 = arith.constant 0 : index
    %44 = vector.load %arg5[%c2, %c0_26, %c0_27] : memref<3x256x3xf32, #tpu.memory_space<vmem>>, vector<1x256x3xf32>
    %45 = vector.shape_cast %44 : vector<1x256x3xf32> to vector<256x3xf32>
    %cst_28 = arith.constant dense<0.000000e+00> : vector<1x3xf32>
    %46 = tpu.matmul %43, %45, %cst_28 {dimension_numbers = #tpu.dot_dimension_numbers<[1], [0], [0], [1], [0, 0, 1, 1], [], []>} : vector<1x256xf32>, vector<256x3xf32>, vector<1x3xf32> -> vector<1x3xf32>
    %47 = arith.addf %42, %46 : vector<1x3xf32>
    %c0_29 = arith.constant 0 : index
    %c0_30 = arith.constant 0 : index
    %c0_31 = arith.constant 0 : index
    %48 = vector.load %arg7[%c0_29, %c0_30, %c0_31] : memref<1x1x3xf32, #tpu.memory_space<vmem>>, vector<1x1x3xf32>
    %49 = vector.shape_cast %48 : vector<1x1x3xf32> to vector<1x3xf32>
    %50 = vector.shape_cast %47 : vector<1x3xf32> to vector<1x1x3xf32>
    tpu.vector_store %arg7[%c0_29, %c0_30, %c0_31], %50 {strides = array<i32>} : memref<1x1x3xf32, #tpu.memory_space<vmem>>, vector<1x1x3xf32>,
    return
  }
  func.func @transform_0(%arg0: i32) -> (i32, i32, i32) {
    %c0_i32 = arith.constant 0 : i32
    %c0_i32_0 = arith.constant 0 : i32
    %c0_i32_1 = arith.constant 0 : i32
    return %arg0, %c0_i32, %c0_i32_0 : i32, i32, i32
  }
  func.func @transform_1(%arg0: i32) -> (i32, i32, i32) {
    %c0_i32 = arith.constant 0 : i32
    %c0_i32_0 = arith.constant 0 : i32
    %c0_i32_1 = arith.constant 0 : i32
    return %arg0, %c0_i32, %c0_i32_0 : i32, i32, i32
  }
  func.func @transform_2(%arg0: i32) -> (i32, i32) {
    %c0_i32 = arith.constant 0 : i32
    %c0_i32_0 = arith.constant 0 : i32
    %c0_i32_1 = arith.constant 0 : i32
    return %c0_i32, %c0_i32_0 : i32, i32
  }
  func.func @transform_3(%arg0: i32) -> (i32, i32) {
    %c0_i32 = arith.constant 0 : i32
    %c0_i32_0 = arith.constant 0 : i32
    %c0_i32_1 = arith.constant 0 : i32
    return %c0_i32, %c0_i32_0 : i32, i32
  }
  func.func @transform_4(%arg0: i32) -> (i32, i32, i32) {
    %c0_i32 = arith.constant 0 : i32
    %c0_i32_0 = arith.constant 0 : i32
    %c0_i32_1 = arith.constant 0 : i32
    %c0_i32_2 = arith.constant 0 : i32
    return %c0_i32, %c0_i32_0, %c0_i32_1 : i32, i32, i32
  }
  func.func @transform_5(%arg0: i32) -> (i32, i32) {
    %c0_i32 = arith.constant 0 : i32
    %c0_i32_0 = arith.constant 0 : i32
    %c0_i32_1 = arith.constant 0 : i32
    return %c0_i32, %c0_i32_0 : i32, i32
  }
  func.func @transform_6(%arg0: i32) -> (i32, i32, i32) {
    %c0_i32 = arith.constant 0 : i32
    %c0_i32_0 = arith.constant 0 : i32
    %c0_i32_1 = arith.constant 0 : i32
    return %arg0, %c0_i32, %c0_i32_0 : i32, i32, i32
  }
}

</mosaic_0001>

<llo_original>
// kernel: tpu_custom_call.1
$region0: #{tpu_custom_call.1}
  #allocation0 [shape = 'u32[]', space=smem, size = 0x4, offset = 0x4, fixed_abs, tag = 'smem constant byte address 0x4 - core index']
  #allocation1 [shape = 'u32[144,128]{1,0:T(1,128)}', space=vmem, size = 0x12000, scoped, tag = 'internal scratch']
  %s0 = inlined_call_operand.vmem [shape: f32[2,64,256], index: 0, kind: input, shape index: {}]
  %s1 = inlined_call_operand.vmem [shape: f32[2,1,64], index: 1, kind: input, shape index: {}]
  %s2 = inlined_call_operand.vmem [shape: f32[256,256], index: 2, kind: input, shape index: {}]
  %s3 = inlined_call_operand.vmem [shape: f32[1,256], index: 3, kind: input, shape index: {}]
  %s4 = inlined_call_operand.vmem [shape: f32[3,256,3], index: 4, kind: input, shape index: {}]
  %s5 = inlined_call_operand.vmem [shape: f32[1,3], index: 5, kind: input, shape index: {}]
  %s6 = inlined_call_operand.hbm [shape: f32[2,1,3], index: 6, kind: output, shape index: {}]
  %s7 = sld [smem:[#allocation0]]
  $region57: #{tpu_custom_call.1} parent=0
    _
  %s9 = ssub.s32 1, %s7
  %s10 = scalar_select 0, %s9, %s7
  $region1: #{tpu_custom_call.1} parent=0
    #allocation2 [shape = 'u8[1024]{0}', space=vmem, size = 0x400, scoped, tag = 'output window, operand 0']
    #allocation3 [shape = 's32[2]{0}', space=sflag, size = 0x8, scoped, tag = 'scoped memory for tpu_custom_call.1']
    %11 = vsyncpa [#allocation3], 0
    %s12 = scalar_lea.sflag [#allocation3], 1
    %13 = vsyncpa %s12, 0
    loop: start=0, step=1, limit=4
    $region2: #{tpu_custom_call.1} parent=1 // loop_pre_header
      _
    $region3: #{tpu_custom_call.1} parent=1 // loop_header
      %s15 = sphi 0, %s19
      %p16 = scmp.ge.s32.totalorder %s15, 4
      %s25 = sphi 0, %s27
      %s28 = sphi 0, %s25
      %s29 = sphi 0, %s28
      %s45 = sphi 0, %s29
      %s51 = sphi 0, %s53
      %s54 = sphi 0, %s51
      %s55 = sphi 0, %s54
      %s71 = sphi 0, %s55
      %s75 = sphi 0, %s75
      %s77 = sphi 0, %s75
      %s78 = sphi 0, %s77
      %s92 = sphi 0, %s78
      %s96 = sphi 0, %s96
      %s98 = sphi 0, %s96
      %s99 = sphi 0, %s98
      %s113 = sphi 0, %s99
      %s117 = sphi 0, %s117
      %s119 = sphi 0, %s117
      %s120 = sphi 0, %s119
      %s134 = sphi 0, %s120
      %s138 = sphi 0, %s138
      %s140 = sphi 0, %s138
      %s141 = sphi 0, %s140
      %s155 = sphi 0, %s141
      %s161 = sphi 0, %s163
      %s164 = sphi 0, %s161
      %s165 = sphi 0, %s164
      %s181 = sphi 0, %s165
    $region4: #{tpu_custom_call.1} parent=1 // loop_header_branch
      %18 = sbr.rel (%p16) target = $region8
    $region5: #{tpu_custom_call.1} parent=1 // loop_body
      %s20 = ssub.s32 %s15, 1
      %s21 = ssub.s32 %s15, 2
      %s22 = sadd.s32 %s15, 1
      %s23 = ssub.s32 %s15, %s22
      %p24 = scmp.eq.s32.totalorder %s23, 0
      %s26 = sadd.s32 %s25, 1
      %s27 = scalar_select %p24, %s25, %s26
      %p30 = pneg %p24
      %p31 = scmp.eq.s32.totalorder %s15, 1
      %p32 = por %p30, %p31
      %p33 = scmp.ne.s32.totalorder %s25, %s28
      %p34 = scmp.eq.s32.totalorder %s15, 0
      %p35 = por %p33, %p34
      %p36 = scmp.ne.s32.totalorder %s25, %s28
      %p37 = scmp.eq.s32.totalorder %s20, 1
      %p38 = por %p36, %p37
      %p39 = scmp.ne.s32.totalorder %s28, %s29
      %p40 = scmp.eq.s32.totalorder %s20, 0
      %p41 = por %p39, %p40
      %p42 = scmp.ne.s32.totalorder %s28, %s29
      %p43 = scmp.eq.s32.totalorder %s21, 1
      %p44 = por %p42, %p43
      %p46 = scmp.ne.s32.totalorder %s29, %s45
      %p47 = scmp.eq.s32.totalorder %s21, 0
      %p48 = por %p46, %p47
      %s49 = ssub.s32 %s15, %s22
      %p50 = scmp.eq.s32.totalorder %s49, 0
      %s52 = sadd.s32 %s51, 1
      %s53 = scalar_select %p50, %s51, %s52
      %p56 = pneg %p50
      %p57 = scmp.eq.s32.totalorder %s15, 1
      %p58 = por %p56, %p57
      %p59 = scmp.ne.s32.totalorder %s51, %s54
      %p60 = scmp.eq.s32.totalorder %s15, 0
      %p61 = por %p59, %p60
      %p62 = scmp.ne.s32.totalorder %s51, %s54
      %p63 = scmp.eq.s32.totalorder %s20, 1
      %p64 = por %p62, %p63
      %p65 = scmp.ne.s32.totalorder %s54, %s55
      %p66 = scmp.eq.s32.totalorder %s20, 0
      %p67 = por %p65, %p66
      %p68 = scmp.ne.s32.totalorder %s54, %s55
      %p69 = scmp.eq.s32.totalorder %s21, 1
      %p70 = por %p68, %p69
      %p72 = scmp.ne.s32.totalorder %s55, %s71
      %p73 = scmp.eq.s32.totalorder %s21, 0
      %p74 = por %p72, %p73
      %s76 = sadd.s32 %s75, 1
      %p79 = scmp.eq.s32.totalorder %s15, 1
      %p80 = scmp.ne.s32.totalorder %s75, %s77
      %p81 = scmp.eq.s32.totalorder %s15, 0
      %p82 = por %p80, %p81
      %p83 = scmp.ne.s32.totalorder %s75, %s77
      %p84 = scmp.eq.s32.totalorder %s20, 1
      %p85 = por %p83, %p84
      %p86 = scmp.ne.s32.totalorder %s77, %s78
      %p87 = scmp.eq.s32.totalorder %s20, 0
      %p88 = por %p86, %p87
      %p89 = scmp.ne.s32.totalorder %s77, %s78
      %p90 = scmp.eq.s32.totalorder %s21, 1
      %p91 = por %p89, %p90
      %p93 = scmp.ne.s32.totalorder %s78, %s92
      %p94 = scmp.eq.s32.totalorder %s21, 0
      %p95 = por %p93, %p94
      %s97 = sadd.s32 %s96, 1
      %p100 = scmp.eq.s32.totalorder %s15, 1
      %p101 = scmp.ne.s32.totalorder %s96, %s98
      %p102 = scmp.eq.s32.totalorder %s15, 0
      %p103 = por %p101, %p102
      %p104 = scmp.ne.s32.totalorder %s96, %s98
      %p105 = scmp.eq.s32.totalorder %s20, 1
      %p106 = por %p104, %p105
      %p107 = scmp.ne.s32.totalorder %s98, %s99
      %p108 = scmp.eq.s32.totalorder %s20, 0
      %p109 = por %p107, %p108
      %p110 = scmp.ne.s32.totalorder %s98, %s99
      %p111 = scmp.eq.s32.totalorder %s21, 1
      %p112 = por %p110, %p111
      %p114 = scmp.ne.s32.totalorder %s99, %s113
      %p115 = scmp.eq.s32.totalorder %s21, 0
      %p116 = por %p114, %p115
      %s118 = sadd.s32 %s117, 1
      %p121 = scmp.eq.s32.totalorder %s15, 1
      %p122 = scmp.ne.s32.totalorder %s117, %s119
      %p123 = scmp.eq.s32.totalorder %s15, 0
      %p124 = por %p122, %p123
      %p125 = scmp.ne.s32.totalorder %s117, %s119
      %p126 = scmp.eq.s32.totalorder %s20, 1
      %p127 = por %p125, %p126
      %p128 = scmp.ne.s32.totalorder %s119, %s120
      %p129 = scmp.eq.s32.totalorder %s20, 0
      %p130 = por %p128, %p129
      %p131 = scmp.ne.s32.totalorder %s119, %s120
      %p132 = scmp.eq.s32.totalorder %s21, 1
      %p133 = por %p131, %p132
      %p135 = scmp.ne.s32.totalorder %s120, %s134
      %p136 = scmp.eq.s32.totalorder %s21, 0
      %p137 = por %p135, %p136
      %s139 = sadd.s32 %s138, 1
      %p142 = scmp.eq.s32.totalorder %s15, 1
      %p143 = scmp.ne.s32.totalorder %s138, %s140
      %p144 = scmp.eq.s32.totalorder %s15, 0
      %p145 = por %p143, %p144
      %p146 = scmp.ne.s32.totalorder %s138, %s140
      %p147 = scmp.eq.s32.totalorder %s20, 1
      %p148 = por %p146, %p147
      %p149 = scmp.ne.s32.totalorder %s140, %s141
      %p150 = scmp.eq.s32.totalorder %s20, 0
      %p151 = por %p149, %p150
      %p152 = scmp.ne.s32.totalorder %s140, %s141
      %p153 = scmp.eq.s32.totalorder %s21, 1
      %p154 = por %p152, %p153
      %p156 = scmp.ne.s32.totalorder %s141, %s155
      %p157 = scmp.eq.s32.totalorder %s21, 0
      %p158 = por %p156, %p157
      %s159 = ssub.s32 %s15, %s22
      %p160 = scmp.eq.s32.totalorder %s159, 0
      %s162 = sadd.s32 %s161, 1
      %s163 = scalar_select %p160, %s161, %s162
      %p166 = pneg %p160
      %p167 = scmp.eq.s32.totalorder %s15, 1
      %p168 = por %p166, %p167
      %p169 = scmp.ne.s32.totalorder %s161, %s164
      %p170 = scmp.eq.s32.totalorder %s15, 0
      %p171 = por %p169, %p170
      %p172 = scmp.ne.s32.totalorder %s161, %s164
      %p173 = scmp.eq.s32.totalorder %s20, 1
      %p174 = por %p172, %p173
      %p175 = scmp.ne.s32.totalorder %s164, %s165
      %p176 = scmp.eq.s32.totalorder %s20, 0
      %p177 = por %p175, %p176
      %p178 = scmp.ne.s32.totalorder %s164, %s165
      %p179 = scmp.eq.s32.totalorder %s21, 1
      %p180 = por %p178, %p179
      %p182 = scmp.ne.s32.totalorder %s165, %s181
      %p183 = scmp.eq.s32.totalorder %s21, 0
      %p184 = por %p182, %p183
      %p185 = scmp.le.s32.totalorder 1, %s15
      %p186 = scmp.lt.s32.totalorder %s15, 3
      %p187 = pnand %p185, %p186
      %p188 = pneg %p187
      // Predicated region
      $region9: #{tpu_custom_call.1} parent=5 // pred_check
        _
      $region10: #{tpu_custom_call.1} parent=5 // pred_check_branch
        %190 = sbr.rel (%p187) target = $region12
      $region11: #{tpu_custom_call.1} parent=5 // pred_region
        %s191 = ssub.s32 %s15, 1
        // Predicated region
        $region13: #{tpu_custom_call.1} parent=11 // pred_check
          %p192 = pneg %p88
        $region14: #{tpu_custom_call.1} parent=11 // pred_check_branch
          %194 = sbr.rel (%p192) target = $region16
        $region15: #{tpu_custom_call.1} parent=11 // pred_region
          _
        $region16: #{tpu_custom_call.1} parent=11 // pred_fallthru
          _
        // Predicated region
        $region17: #{tpu_custom_call.1} parent=11 // pred_check
          %p195 = pneg %p109
        $region18: #{tpu_custom_call.1} parent=11 // pred_check_branch
          %197 = sbr.rel (%p195) target = $region20
        $region19: #{tpu_custom_call.1} parent=11 // pred_region
          _
        $region20: #{tpu_custom_call.1} parent=11 // pred_fallthru
          _
        // Predicated region
        $region21: #{tpu_custom_call.1} parent=11 // pred_check
          %p198 = pneg %p130
        $region22: #{tpu_custom_call.1} parent=11 // pred_check_branch
          %200 = sbr.rel (%p198) target = $region24
        $region23: #{tpu_custom_call.1} parent=11 // pred_region
          _
        $region24: #{tpu_custom_call.1} parent=11 // pred_fallthru
          _
        // Predicated region
        $region25: #{tpu_custom_call.1} parent=11 // pred_check
          %p201 = pneg %p151
        $region26: #{tpu_custom_call.1} parent=11 // pred_check_branch
          %203 = sbr.rel (%p201) target = $region28
        $region27: #{tpu_custom_call.1} parent=11 // pred_region
          _
        $region28: #{tpu_custom_call.1} parent=11 // pred_fallthru
          _
      $region12: #{tpu_custom_call.1} parent=5 // pred_fallthru
        _
      %p204 = scmp.lt.s32.totalorder %s15, 2
      // Predicated region
      $region29: #{tpu_custom_call.1} parent=5 // pred_check
        %p205 = pneg %p204
      $region30: #{tpu_custom_call.1} parent=5 // pred_check_branch
        %207 = sbr.rel (%p205) target = $region32
      $region31: #{tpu_custom_call.1} parent=5 // pred_region
        // Predicated region
        $region33: #{tpu_custom_call.1} parent=31 // pred_check
          %p208 = pneg %p35
        $region34: #{tpu_custom_call.1} parent=31 // pred_check_branch
          %210 = sbr.rel (%p208) target = $region36
        $region35: #{tpu_custom_call.1} parent=31 // pred_region
          %p211 = scmp.lt.s32.totalorder %s15, 1
          %s212 = scalar_select %p211, %s15, 1
          %s213 = smul.addr %s212, 16
          %s214 = smul.addr %s213, 8
          %s215 = scalar_lea.vmem %s0, %s214
        $region36: #{tpu_custom_call.1} parent=31 // pred_fallthru
          _
        // Predicated region
        $region37: #{tpu_custom_call.1} parent=31 // pred_check
          %p216 = pneg %p61
        $region38: #{tpu_custom_call.1} parent=31 // pred_check_branch
          %218 = sbr.rel (%p216) target = $region40
        $region39: #{tpu_custom_call.1} parent=31 // pred_region
          %p219 = scmp.lt.s32.totalorder %s15, 1
          %s220 = scalar_select %p219, %s15, 1
          %s221 = scalar_lea.vmem %s1, %s220
        $region40: #{tpu_custom_call.1} parent=31 // pred_fallthru
          _
      $region32: #{tpu_custom_call.1} parent=5 // pred_fallthru
        _
      %p222 = scmp.le.s32.totalorder 1, %s15
      %p223 = scmp.lt.s32.totalorder %s15, 3
      %p224 = pnand %p222, %p223
      %p225 = pneg %p224
      // Predicated region
      $region41: #{tpu_custom_call.1} parent=5 // pred_check
        _
      $region42: #{tpu_custom_call.1} parent=5 // pred_check_branch
        %227 = sbr.rel (%p224) target = $region44
      $region43: #{tpu_custom_call.1} parent=5 // pred_region
        %s228 = ssub.s32 %s15, 1
        %p229 = scmp.lt.s32.totalorder %s20, 1
        %s230 = scalar_select %p229, %s20, 1
        %s231 = smul.addr %s230, 16
        %s232 = smul.addr %s231, 8
        %s233 = scalar_lea.vmem %s0, %s232
        %p234 = pneg %p41
        %p235 = pneg %p38
        %p236 = scmp.lt.s32.totalorder %s20, 1
        %s237 = scalar_select %p236, %s20, 1
        %s238 = scalar_lea.vmem %s1, %s237
        %p239 = pneg %p67
        %p240 = pneg %p64
        %p241 = pneg %p88
        %p242 = pneg %p85
        %p243 = pneg %p109
        %p244 = pneg %p106
        %p245 = pneg %p130
        %p246 = pneg %p127
        %p247 = pneg %p151
        %p248 = pneg %p148
        %p249 = pneg %p177
        %p250 = pneg %p174
        %s251 = sand.u32 %s164, 1
        %s252 = scalar_lea.sflag [#allocation3], %s251
        %s253 = sand.u32 %s164, 1
        %s254 = scalar_lea.vmem [#allocation2], %s253
        %p255 = scmp.lt.s32.totalorder %s20, 1
        %s256 = scalar_select %p255, %s20, 1
        %s257 = smul.addr %s256, 16
        %s258 = smul.addr %s257, 8
        %s259 = scalar_lea.vmem %s0, %s258
        %p260 = scmp.lt.s32.totalorder %s20, 1
        %s261 = scalar_select %p260, %s20, 1
        %s262 = scalar_lea.vmem %s1, %s261
        %v263 = vld [vmem:[%s259] sm:$0xff]
        %v264 = vld [vmem:[%s259 + $0x8] sm:$0xff]
        %v265 = vld [vmem:[%s259 + $0x10] sm:$0xff]
        %v266 = vld [vmem:[%s259 + $0x18] sm:$0xff]
        %v267 = vld [vmem:[%s259 + $0x20] sm:$0xff]
        %v268 = vld [vmem:[%s259 + $0x28] sm:$0xff]
        %v269 = vld [vmem:[%s259 + $0x30] sm:$0xff]
        %v270 = vld [vmem:[%s259 + $0x38] sm:$0xff]
        %v271 = vld [vmem:[%s259 + $0x40] sm:$0xff]
        %v272 = vld [vmem:[%s259 + $0x48] sm:$0xff]
        %v273 = vld [vmem:[%s259 + $0x50] sm:$0xff]
        %v274 = vld [vmem:[%s259 + $0x58] sm:$0xff]
        %v275 = vld [vmem:[%s259 + $0x60] sm:$0xff]
        %v276 = vld [vmem:[%s259 + $0x68] sm:$0xff]
        %v277 = vld [vmem:[%s259 + $0x70] sm:$0xff]
        %v278 = vld [vmem:[%s259 + $0x78] sm:$0xff]
        %v279 = vld [vmem:[%s2] sm:$0xff]
        %v280 = vld [vmem:[%s2 + $0x8] sm:$0xff]
        %v281 = vld [vmem:[%s2 + $0x10] sm:$0xff]
        %v282 = vld [vmem:[%s2 + $0x18] sm:$0xff]
        %v283 = vld [vmem:[%s2 + $0x20] sm:$0xff]
        %v284 = vld [vmem:[%s2 + $0x28] sm:$0xff]
        %v285 = vld [vmem:[%s2 + $0x30] sm:$0xff]
        %v286 = vld [vmem:[%s2 + $0x38] sm:$0xff]
        %v287 = vld [vmem:[%s2 + $0x40] sm:$0xff]
        %v288 = vld [vmem:[%s2 + $0x48] sm:$0xff]
        %v289 = vld [vmem:[%s2 + $0x50] sm:$0xff]
        %v290 = vld [vmem:[%s2 + $0x58] sm:$0xff]
        %v291 = vld [vmem:[%s2 + $0x60] sm:$0xff]
        %v292 = vld [vmem:[%s2 + $0x68] sm:$0xff]
        %v293 = vld [vmem:[%s2 + $0x70] sm:$0xff]
        %v294 = vld [vmem:[%s2 + $0x78] sm:$0xff]
        %v295 = vld [vmem:[%s2 + $0x80] sm:$0xff]
        %v296 = vld [vmem:[%s2 + $0x88] sm:$0xff]
        %v297 = vld [vmem:[%s2 + $0x90] sm:$0xff]
        %v298 = vld [vmem:[%s2 + $0x98] sm:$0xff]
        %v299 = vld [vmem:[%s2 + $0xa0] sm:$0xff]
        %v300 = vld [vmem:[%s2 + $0xa8] sm:$0xff]
        %v301 = vld [vmem:[%s2 + $0xb0] sm:$0xff]
        %v302 = vld [vmem:[%s2 + $0xb8] sm:$0xff]
        %v303 = vld [vmem:[%s2 + $0xc0] sm:$0xff]
        %v304 = vld [vmem:[%s2 + $0xc8] sm:$0xff]
        %v305 = vld [vmem:[%s2 + $0xd0] sm:$0xff]
        %v306 = vld [vmem:[%s2 + $0xd8] sm:$0xff]
        %v307 = vld [vmem:[%s2 + $0xe0] sm:$0xff]
        %v308 = vld [vmem:[%s2 + $0xe8] sm:$0xff]
        %v309 = vld [vmem:[%s2 + $0xf0] sm:$0xff]
        %v310 = vld [vmem:[%s2 + $0xf8] sm:$0xff]
        %v311 = vld [vmem:[%s2 + $0x100] sm:$0xff]
        %v312 = vld [vmem:[%s2 + $0x108] sm:$0xff]
        %v313 = vld [vmem:[%s2 + $0x110] sm:$0xff]
        %v314 = vld [vmem:[%s2 + $0x118] sm:$0xff]
        %v315 = vld [vmem:[%s2 + $0x120] sm:$0xff]
        %v316 = vld [vmem:[%s2 + $0x128] sm:$0xff]
        %v317 = vld [vmem:[%s2 + $0x130] sm:$0xff]
        %v318 = vld [vmem:[%s2 + $0x138] sm:$0xff]
        %v319 = vld [vmem:[%s2 + $0x140] sm:$0xff]
        %v320 = vld [vmem:[%s2 + $0x148] sm:$0xff]
        %v321 = vld [vmem:[%s2 + $0x150] sm:$0xff]
        %v322 = vld [vmem:[%s2 + $0x158] sm:$0xff]
        %v323 = vld [vmem:[%s2 + $0x160] sm:$0xff]
        %v324 = vld [vmem:[%s2 + $0x168] sm:$0xff]
        %v325 = vld [vmem:[%s2 + $0x170] sm:$0xff]
        %v326 = vld [vmem:[%s2 + $0x178] sm:$0xff]
        %v327 = vld [vmem:[%s2 + $0x180] sm:$0xff]
        %v328 = vld [vmem:[%s2 + $0x188] sm:$0xff]
        %v329 = vld [vmem:[%s2 + $0x190] sm:$0xff]
        %v330 = vld [vmem:[%s2 + $0x198] sm:$0xff]
        %v331 = vld [vmem:[%s2 + $0x1a0] sm:$0xff]
        %v332 = vld [vmem:[%s2 + $0x1a8] sm:$0xff]
        %v333 = vld [vmem:[%s2 + $0x1b0] sm:$0xff]
        %v334 = vld [vmem:[%s2 + $0x1b8] sm:$0xff]
        %v335 = vld [vmem:[%s2 + $0x1c0] sm:$0xff]
        %v336 = vld [vmem:[%s2 + $0x1c8] sm:$0xff]
        %v337 = vld [vmem:[%s2 + $0x1d0] sm:$0xff]
        %v338 = vld [vmem:[%s2 + $0x1d8] sm:$0xff]
        %v339 = vld [vmem:[%s2 + $0x1e0] sm:$0xff]
        %v340 = vld [vmem:[%s2 + $0x1e8] sm:$0xff]
        %v341 = vld [vmem:[%s2 + $0x1f0] sm:$0xff]
        %v342 = vld [vmem:[%s2 + $0x1f8] sm:$0xff]
        %v343 = vld [vmem:[%s3] sm:$0x3]
        %v345 = vlaneseq
        %v346 = vshrl.u32 %v345, 7
        %v347 = vsub.s32 0, %v346
        %v348 = vrot.slane %v343, %v347
        %v349 = vlaneseq
        %v350 = vshrl.u32 %v349, 7
        %v351 = vsub.s32 1, %v350
        %v352 = vrot.slane %v343, %v351
        %355 = vmatprep.subr.mxu0 %v310
        %356 = vmatpush1.msra.mxu0 %v309
        %357 = vmatprep.subr.mxu0 %v308
        %358 = vmatpush1.msra.mxu0 %v307
        %359 = vmatprep.subr.mxu0 %v306
        %360 = vmatpush1.msra.mxu0 %v305
        %361 = vmatprep.subr.mxu0 %v304
        %362 = vmatpush1.msra.mxu0 %v303
        %363 = vmatprep.subr.mxu0 %v302
        %364 = vmatpush1.msra.mxu0 %v301
        %365 = vmatprep.subr.mxu0 %v300
        %366 = vmatpush1.msra.mxu0 %v299
        %367 = vmatprep.subr.mxu0 %v298
        %368 = vmatpush1.msra.mxu0 %v297
        %369 = vmatprep.subr.mxu0 %v296
        %370 = vmatpush1.msra.mxu0 %v295
        %371 = vmatprep.subr.mxu0 %v294
        %372 = vmatpush1.msra.mxu0 %v293
        %373 = vmatprep.subr.mxu0 %v292
        %374 = vmatpush1.msra.mxu0 %v291
        %375 = vmatprep.subr.mxu0 %v290
        %376 = vmatpush1.msra.mxu0 %v289
        %377 = vmatprep.subr.mxu0 %v288
        %378 = vmatpush1.msra.mxu0 %v287
        %379 = vmatprep.subr.mxu0 %v286
        %380 = vmatpush1.msra.mxu0 %v285
        %381 = vmatprep.subr.mxu0 %v284
        %382 = vmatpush1.msra.mxu0 %v283
        %383 = vmatprep.subr.mxu0 %v282
        %384 = vmatpush1.msra.mxu0 %v281
        %385 = vmatprep.subr.mxu0 %v280
        %386 = vmatpush1.msra.mxu0 %v279
        %387 = vmatprep.subr.mxu0 %v342
        %388 = vmatpush2.msra.mxu0 %v341
        %389 = vmatprep.subr.mxu0 %v340
        %390 = vmatpush2.msra.mxu0 %v339
        %391 = vmatprep.subr.mxu0 %v338
        %392 = vmatpush2.msra.mxu0 %v337
        %393 = vmatprep.subr.mxu0 %v336
        %394 = vmatpush2.msra.mxu0 %v335
        %395 = vmatprep.subr.mxu0 %v334
        %396 = vmatpush2.msra.mxu0 %v333
        %397 = vmatprep.subr.mxu0 %v332
        %398 = vmatpush2.msra.mxu0 %v331
        %399 = vmatprep.subr.mxu0 %v330
        %400 = vmatpush2.msra.mxu0 %v329
        %401 = vmatprep.subr.mxu0 %v328
        %402 = vmatpush2.msra.mxu0 %v327
        %403 = vmatprep.subr.mxu0 %v326
        %404 = vmatpush2.msra.mxu0 %v325
        %405 = vmatprep.subr.mxu0 %v324
        %406 = vmatpush2.msra.mxu0 %v323
        %407 = vmatprep.subr.mxu0 %v322
        %408 = vmatpush2.msra.mxu0 %v321
        %409 = vmatprep.subr.mxu0 %v320
        %410 = vmatpush2.msra.mxu0 %v319
        %411 = vmatprep.subr.mxu0 %v318
        %412 = vmatpush2.msra.mxu0 %v317
        %413 = vmatprep.subr.mxu0 %v316
        %414 = vmatpush2.msra.mxu0 %v315
        %415 = vmatprep.subr.mxu0 %v314
        %416 = vmatpush2.msra.mxu0 %v313
        %417 = vmatprep.subr.mxu0 %v312
        %418 = vmatpush2.msra.mxu0 %v311
        %419 = vmatprep.mubr.f32.mxu0 %v264
        %420 = vmatmul.mubr.f32.gmra.mxu0 %v263
        %v421 = vpop.f32.mrf.mxu0
        %v422 = vadd.f32 %v348, %v421
        %v423 = vpop.f32.mrf.mxu0
        %v424 = vadd.f32 %v352, %v423
        %425 = vmatprep.mubr.f32.mxu0 %v266
        %426 = vmatmul.mubr.f32.gmra.mxu0 %v265
        %v427 = vpop.f32.mrf.mxu0
        %v428 = vadd.f32 %v348, %v427
        %v429 = vpop.f32.mrf.mxu0
        %v430 = vadd.f32 %v352, %v429
        %431 = vmatprep.mubr.f32.mxu0 %v268
        %432 = vmatmul.mubr.f32.gmra.mxu0 %v267
        %v433 = vpop.f32.mrf.mxu0
        %v434 = vadd.f32 %v348, %v433
        %v435 = vpop.f32.mrf.mxu0
        %v436 = vadd.f32 %v352, %v435
        %437 = vmatprep.mubr.f32.mxu0 %v270
        %438 = vmatmul.mubr.f32.gmra.mxu0 %v269
        %v439 = vpop.f32.mrf.mxu0
        %v440 = vadd.f32 %v348, %v439
        %v441 = vpop.f32.mrf.mxu0
        %v442 = vadd.f32 %v352, %v441
        %443 = vmatprep.mubr.f32.mxu0 %v272
        %444 = vmatmul.mubr.f32.gmra.mxu0 %v271
        %v445 = vpop.f32.mrf.mxu0
        %v446 = vadd.f32 %v348, %v445
        %v447 = vpop.f32.mrf.mxu0
        %v448 = vadd.f32 %v352, %v447
        %449 = vmatprep.mubr.f32.mxu0 %v274
        %450 = vmatmul.mubr.f32.gmra.mxu0 %v273
        %v451 = vpop.f32.mrf.mxu0
        %v452 = vadd.f32 %v348, %v451
        %v453 = vpop.f32.mrf.mxu0
        %v454 = vadd.f32 %v352, %v453
        %455 = vmatprep.mubr.f32.mxu0 %v276
        %456 = vmatmul.mubr.f32.gmra.mxu0 %v275
        %v457 = vpop.f32.mrf.mxu0
        %v458 = vadd.f32 %v348, %v457
        %v459 = vpop.f32.mrf.mxu0
        %v460 = vadd.f32 %v352, %v459
        %461 = vmatprep.mubr.f32.mxu0 %v278
        %462 = vmatmul.mubr.f32.gmra.mxu0 %v277
        %v463 = vpop.f32.mrf.mxu0
        %v464 = vadd.f32 %v348, %v463
        %v465 = vpop.f32.mrf.mxu0
        %v466 = vadd.f32 %v352, %v465
        %467 = vdwg.mxu0
        %v468 = vld [vmem:[%s262] sm:$0x1]
        %v469 = vsub.f32 1.0, %v468
        %v470 = vadd.f32 %v468, %v469
        %vm471 = vcmask 516096
        %v472 = vsel %vm471, %v468, 0.0
        %473 = vadd.xlane.f32.xlu0 %v472
        %v474 = vpop.xlane.xlu0 %473
        %v475 = vsel %vm471, %v469, 0.0
        %476 = vadd.xlane.f32.xlu0 %v475
        %v477 = vpop.xlane.xlu0 %476
        %v478 = vsel %vm471, %v470, 0.0
        %479 = vadd.xlane.f32.xlu0 %v478
        %v480 = vpop.xlane.xlu0 %479
        %v481 = vadd.f32 %v474, 1e-06
        %v482 = vrcp.pop %v481
        %v483 = vmul.f32 %v468, %v482
        %v484 = vadd.f32 %v477, 1e-06
        %v485 = vrcp.pop %v484
        %v486 = vmul.f32 %v469, %v485
        %v487 = vadd.f32 %v480, 1e-06
        %v488 = vrcp.pop %v487
        %v489 = vmul.f32 %v470, %v488
        %v491 = vlaneseq
        %v492 = vshrl.u32 %v491, 7
        %v493 = vsub.s32 0, %v492
        %v494 = vrot.slane %v486, %v493
        %v497 = vlaneseq
        %v498 = vshrl.u32 %v497, 7
        %v499 = vsub.s32 0, %v498
        %v500 = vrot.slane %v489, %v499
        %vm502 = vcmask 1040384
        %v503 = vsel %vm502, %v483, %v494
        %vm504 = vcmask 1041408
        %v505 = vsel %vm504, %v503, %v500
        %vm506 = vcmask 523264
        %v508 = vsel %vm506, %v505, 0
        %510 = vmatprep.subr.mxu0 0.0
        %511 = vmatpush1.msra.mxu0 0.0
        %512 = vmatprep.subr.mxu0 0.0
        %513 = vmatpush1.msra.mxu0 0.0
        %514 = vmatprep.subr.mxu0 0.0
        %515 = vmatpush1.msra.mxu0 0.0
        %516 = vmatprep.subr.mxu0 0.0
        %517 = vmatpush1.msra.mxu0 0.0
        %518 = vmatprep.subr.mxu0 0.0
        %519 = vmatpush1.msra.mxu0 0.0
        %520 = vmatprep.subr.mxu0 0.0
        %521 = vmatpush1.msra.mxu0 0.0
        %522 = vmatprep.subr.mxu0 0.0
        %523 = vmatpush1.msra.mxu0 0.0
        %524 = vmatprep.subr.mxu0 0.0
        %525 = vmatpush1.msra.mxu0 0.0
        %526 = vmatprep.subr.mxu0 %v466
        %527 = vmatpush1.msra.mxu0 %v464
        %528 = vmatprep.subr.mxu0 %v460
        %529 = vmatpush1.msra.mxu0 %v458
        %530 = vmatprep.subr.mxu0 %v454
        %531 = vmatpush1.msra.mxu0 %v452
        %532 = vmatprep.subr.mxu0 %v448
        %533 = vmatpush1.msra.mxu0 %v446
        %534 = vmatprep.subr.mxu0 %v442
        %535 = vmatpush1.msra.mxu0 %v440
        %536 = vmatprep.subr.mxu0 %v436
        %537 = vmatpush1.msra.mxu0 %v434
        %538 = vmatprep.subr.mxu0 %v430
        %539 = vmatpush1.msra.mxu0 %v428
        %540 = vmatprep.subr.mxu0 %v424
        %541 = vmatpush1.msra.mxu0 %v422
        %542 = vmatprep.subr.mxu0 0.0
        %543 = vmatpush2.msra.mxu0 0.0
        %544 = vmatprep.subr.mxu0 0.0
        %545 = vmatpush2.msra.mxu0 0.0
        %546 = vmatprep.subr.mxu0 0.0
        %547 = vmatpush2.msra.mxu0 0.0
        %548 = vmatprep.subr.mxu0 0.0
        %549 = vmatpush2.msra.mxu0 0.0
        %550 = vmatprep.subr.mxu0 0.0
        %551 = vmatpush2.msra.mxu0 0.0
        %552 = vmatprep.subr.mxu0 0.0
        %553 = vmatpush2.msra.mxu0 0.0
        %554 = vmatprep.subr.mxu0 0.0
        %555 = vmatpush2.msra.mxu0 0.0
        %556 = vmatprep.subr.mxu0 0.0
        %557 = vmatpush2.msra.mxu0 0.0
        %558 = vmatprep.subr.mxu0 0.0
        %559 = vmatpush2.msra.mxu0 0.0
        %560 = vmatprep.subr.mxu0 0.0
        %561 = vmatpush2.msra.mxu0 0.0
        %562 = vmatprep.subr.mxu0 0.0
        %563 = vmatpush2.msra.mxu0 0.0
        %564 = vmatprep.subr.mxu0 0.0
        %565 = vmatpush2.msra.mxu0 0.0
        %566 = vmatprep.subr.mxu0 0.0
        %567 = vmatpush2.msra.mxu0 0.0
        %568 = vmatprep.subr.mxu0 0.0
        %569 = vmatpush2.msra.mxu0 0.0
        %570 = vmatprep.subr.mxu0 0.0
        %571 = vmatpush2.msra.mxu0 0.0
        %572 = vmatprep.subr.mxu0 0.0
        %573 = vmatpush2.msra.mxu0 0.0
        %574 = vmatprep.mubr.f32.mxu0 0.0
        %575 = vmatmul.mubr.f32.gmra.mxu0 %v508
        %v576 = vpop.f32.mrf.mxu0
        %v577 = vadd.f32 0.0, %v576
        %v578 = vpop.f32.mrf.mxu0
        %v579 = vadd.f32 0.0, %v578
        %580 = vdwg.mxu0
        %v581 = vld [vmem:[%s5] sm:$0x1]
        %v582 = vld [vmem:[%s4] sm:$0xff]
        %v583 = vld [vmem:[%s4 + $0x8] sm:$0xff]
        %v584 = vld [vmem:[%s4 + $0x10] sm:$0xff]
        %v585 = vld [vmem:[%s4 + $0x18] sm:$0xff]
        %v586 = vld [vmem:[%s4 + $0x20] sm:$0xff]
        %v587 = vld [vmem:[%s4 + $0x28] sm:$0xff]
        %v588 = vld [vmem:[%s4 + $0x30] sm:$0xff]
        %v589 = vld [vmem:[%s4 + $0x38] sm:$0xff]
        %v590 = vld [vmem:[%s4 + $0x40] sm:$0xff]
        %v591 = vld [vmem:[%s4 + $0x48] sm:$0xff]
        %v592 = vld [vmem:[%s4 + $0x50] sm:$0xff]
        %v593 = vld [vmem:[%s4 + $0x58] sm:$0xff]
        %v594 = vld [vmem:[%s4 + $0x60] sm:$0xff]
        %v595 = vld [vmem:[%s4 + $0x68] sm:$0xff]
        %v596 = vld [vmem:[%s4 + $0x70] sm:$0xff]
        %v597 = vld [vmem:[%s4 + $0x78] sm:$0xff]
        %v598 = vld [vmem:[%s4 + $0x80] sm:$0xff]
        %v599 = vld [vmem:[%s4 + $0x88] sm:$0xff]
        %v600 = vld [vmem:[%s4 + $0x90] sm:$0xff]
        %v601 = vld [vmem:[%s4 + $0x98] sm:$0xff]
        %v602 = vld [vmem:[%s4 + $0xa0] sm:$0xff]
        %v603 = vld [vmem:[%s4 + $0xa8] sm:$0xff]
        %v604 = vld [vmem:[%s4 + $0xb0] sm:$0xff]
        %v605 = vld [vmem:[%s4 + $0xb8] sm:$0xff]
        %v606 = vld [vmem:[%s4 + $0xc0] sm:$0xff]
        %v607 = vld [vmem:[%s4 + $0xc8] sm:$0xff]
        %v608 = vld [vmem:[%s4 + $0xd0] sm:$0xff]
        %v609 = vld [vmem:[%s4 + $0xd8] sm:$0xff]
        %v610 = vld [vmem:[%s4 + $0xe0] sm:$0xff]
        %v611 = vld [vmem:[%s4 + $0xe8] sm:$0xff]
        %v612 = vld [vmem:[%s4 + $0xf0] sm:$0xff]
        %v613 = vld [vmem:[%s4 + $0xf8] sm:$0xff]
        %614 = vmatprep.subr.mxu0 0.0
        %615 = vmatpush1.msra.mxu0 %v597
        %616 = vmatprep.subr.mxu0 0.0
        %617 = vmatpush1.msra.mxu0 %v596
        %618 = vmatprep.subr.mxu0 0.0
        %619 = vmatpush1.msra.mxu0 %v595
        %620 = vmatprep.subr.mxu0 0.0
        %621 = vmatpush1.msra.mxu0 %v594
        %622 = vmatprep.subr.mxu0 0.0
        %623 = vmatpush1.msra.mxu0 %v593
        %624 = vmatprep.subr.mxu0 0.0
        %625 = vmatpush1.msra.mxu0 %v592
        %626 = vmatprep.subr.mxu0 0.0
        %627 = vmatpush1.msra.mxu0 %v591
        %628 = vmatprep.subr.mxu0 0.0
        %629 = vmatpush1.msra.mxu0 %v590
        %630 = vmatprep.subr.mxu0 0.0
        %631 = vmatpush1.msra.mxu0 %v589
        %632 = vmatprep.subr.mxu0 0.0
        %633 = vmatpush1.msra.mxu0 %v588
        %634 = vmatprep.subr.mxu0 0.0
        %635 = vmatpush1.msra.mxu0 %v587
        %636 = vmatprep.subr.mxu0 0.0
        %637 = vmatpush1.msra.mxu0 %v586
        %638 = vmatprep.subr.mxu0 0.0
        %639 = vmatpush1.msra.mxu0 %v585
        %640 = vmatprep.subr.mxu0 0.0
        %641 = vmatpush1.msra.mxu0 %v584
        %642 = vmatprep.subr.mxu0 0.0
        %643 = vmatpush1.msra.mxu0 %v583
        %644 = vmatprep.subr.mxu0 0.0
        %645 = vmatpush1.msra.mxu0 %v582
        %646 = vmatprep.subr.mxu0 0.0
        %647 = vmatpush2.msra.mxu0 %v613
        %648 = vmatprep.subr.mxu0 0.0
        %649 = vmatpush2.msra.mxu0 %v612
        %650 = vmatprep.subr.mxu0 0.0
        %651 = vmatpush2.msra.mxu0 %v611
        %652 = vmatprep.subr.mxu0 0.0
        %653 = vmatpush2.msra.mxu0 %v610
        %654 = vmatprep.subr.mxu0 0.0
        %655 = vmatpush2.msra.mxu0 %v609
        %656 = vmatprep.subr.mxu0 0.0
        %657 = vmatpush2.msra.mxu0 %v608
        %658 = vmatprep.subr.mxu0 0.0
        %659 = vmatpush2.msra.mxu0 %v607
        %660 = vmatprep.subr.mxu0 0.0
        %661 = vmatpush2.msra.mxu0 %v606
        %662 = vmatprep.subr.mxu0 0.0
        %663 = vmatpush2.msra.mxu0 %v605
        %664 = vmatprep.subr.mxu0 0.0
        %665 = vmatpush2.msra.mxu0 %v604
        %666 = vmatprep.subr.mxu0 0.0
        %667 = vmatpush2.msra.mxu0 %v603
        %668 = vmatprep.subr.mxu0 0.0
        %669 = vmatpush2.msra.mxu0 %v602
        %670 = vmatprep.subr.mxu0 0.0
        %671 = vmatpush2.msra.mxu0 %v601
        %672 = vmatprep.subr.mxu0 0.0
        %673 = vmatpush2.msra.mxu0 %v600
        %674 = vmatprep.subr.mxu0 0.0
        %675 = vmatpush2.msra.mxu0 %v599
        %676 = vmatprep.subr.mxu0 0.0
        %677 = vmatpush2.msra.mxu0 %v598
        %678 = vmatprep.mubr.f32.mxu0 %v579
        %679 = vmatmul.mubr.f32.gmra.mxu0 %v577
        %v680 = vpop.f32.mrf.mxu0
        %v681 = vadd.f32 0.0, %v680
        %v682 = vpop.f32.mrf.mxu0
        %683 = vdwg.mxu0
        %v684 = vadd.f32 %v581, %v681
        %s685 = scalar_lea.vmem %s4, 256
        %v686 = vld [vmem:[%s685] sm:$0xff]
        %v687 = vld [vmem:[%s685 + $0x8] sm:$0xff]
        %v688 = vld [vmem:[%s685 + $0x10] sm:$0xff]
        %v689 = vld [vmem:[%s685 + $0x18] sm:$0xff]
        %v690 = vld [vmem:[%s685 + $0x20] sm:$0xff]
        %v691 = vld [vmem:[%s685 + $0x28] sm:$0xff]
        %v692 = vld [vmem:[%s685 + $0x30] sm:$0xff]
        %v693 = vld [vmem:[%s685 + $0x38] sm:$0xff]
        %v694 = vld [vmem:[%s685 + $0x40] sm:$0xff]
        %v695 = vld [vmem:[%s685 + $0x48] sm:$0xff]
        %v696 = vld [vmem:[%s685 + $0x50] sm:$0xff]
        %v697 = vld [vmem:[%s685 + $0x58] sm:$0xff]
        %v698 = vld [vmem:[%s685 + $0x60] sm:$0xff]
        %v699 = vld [vmem:[%s685 + $0x68] sm:$0xff]
        %v700 = vld [vmem:[%s685 + $0x70] sm:$0xff]
        %v701 = vld [vmem:[%s685 + $0x78] sm:$0xff]
        %v702 = vld [vmem:[%s685 + $0x80] sm:$0xff]
        %v703 = vld [vmem:[%s685 + $0x88] sm:$0xff]
        %v704 = vld [vmem:[%s685 + $0x90] sm:$0xff]
        %v705 = vld [vmem:[%s685 + $0x98] sm:$0xff]
        %v706 = vld [vmem:[%s685 + $0xa0] sm:$0xff]
        %v707 = vld [vmem:[%s685 + $0xa8] sm:$0xff]
        %v708 = vld [vmem:[%s685 + $0xb0] sm:$0xff]
        %v709 = vld [vmem:[%s685 + $0xb8] sm:$0xff]
        %v710 = vld [vmem:[%s685 + $0xc0] sm:$0xff]
        %v711 = vld [vmem:[%s685 + $0xc8] sm:$0xff]
        %v712 = vld [vmem:[%s685 + $0xd0] sm:$0xff]
        %v713 = vld [vmem:[%s685 + $0xd8] sm:$0xff]
        %v714 = vld [vmem:[%s685 + $0xe0] sm:$0xff]
        %v715 = vld [vmem:[%s685 + $0xe8] sm:$0xff]
        %v716 = vld [vmem:[%s685 + $0xf0] sm:$0xff]
        %v717 = vld [vmem:[%s685 + $0xf8] sm:$0xff]
        %v720 = vrot.slane %v577, 1
        %v721 = vrot.slane %v579, 1
        %724 = vmatprep.subr.mxu0 0.0
        %725 = vmatpush1.msra.mxu0 %v701
        %726 = vmatprep.subr.mxu0 0.0
        %727 = vmatpush1.msra.mxu0 %v700
        %728 = vmatprep.subr.mxu0 0.0
        %729 = vmatpush1.msra.mxu0 %v699
        %730 = vmatprep.subr.mxu0 0.0
        %731 = vmatpush1.msra.mxu0 %v698
        %732 = vmatprep.subr.mxu0 0.0
        %733 = vmatpush1.msra.mxu0 %v697
        %734 = vmatprep.subr.mxu0 0.0
        %735 = vmatpush1.msra.mxu0 %v696
        %736 = vmatprep.subr.mxu0 0.0
        %737 = vmatpush1.msra.mxu0 %v695
        %738 = vmatprep.subr.mxu0 0.0
        %739 = vmatpush1.msra.mxu0 %v694
        %740 = vmatprep.subr.mxu0 0.0
        %741 = vmatpush1.msra.mxu0 %v693
        %742 = vmatprep.subr.mxu0 0.0
        %743 = vmatpush1.msra.mxu0 %v692
        %744 = vmatprep.subr.mxu0 0.0
        %745 = vmatpush1.msra.mxu0 %v691
        %746 = vmatprep.subr.mxu0 0.0
        %747 = vmatpush1.msra.mxu0 %v690
        %748 = vmatprep.subr.mxu0 0.0
        %749 = vmatpush1.msra.mxu0 %v689
        %750 = vmatprep.subr.mxu0 0.0
        %751 = vmatpush1.msra.mxu0 %v688
        %752 = vmatprep.subr.mxu0 0.0
        %753 = vmatpush1.msra.mxu0 %v687
        %754 = vmatprep.subr.mxu0 0.0
        %755 = vmatpush1.msra.mxu0 %v686
        %756 = vmatprep.subr.mxu0 0.0
        %757 = vmatpush2.msra.mxu0 %v717
        %758 = vmatprep.subr.mxu0 0.0
        %759 = vmatpush2.msra.mxu0 %v716
        %760 = vmatprep.subr.mxu0 0.0
        %761 = vmatpush2.msra.mxu0 %v715
        %762 = vmatprep.subr.mxu0 0.0
        %763 = vmatpush2.msra.mxu0 %v714
        %764 = vmatprep.subr.mxu0 0.0
        %765 = vmatpush2.msra.mxu0 %v713
        %766 = vmatprep.subr.mxu0 0.0
        %767 = vmatpush2.msra.mxu0 %v712
        %768 = vmatprep.subr.mxu0 0.0
        %769 = vmatpush2.msra.mxu0 %v711
        %770 = vmatprep.subr.mxu0 0.0
        %771 = vmatpush2.msra.mxu0 %v710
        %772 = vmatprep.subr.mxu0 0.0
        %773 = vmatpush2.msra.mxu0 %v709
        %774 = vmatprep.subr.mxu0 0.0
        %775 = vmatpush2.msra.mxu0 %v708
        %776 = vmatprep.subr.mxu0 0.0
        %777 = vmatpush2.msra.mxu0 %v707
        %778 = vmatprep.subr.mxu0 0.0
        %779 = vmatpush2.msra.mxu0 %v706
        %780 = vmatprep.subr.mxu0 0.0
        %781 = vmatpush2.msra.mxu0 %v705
        %782 = vmatprep.subr.mxu0 0.0
        %783 = vmatpush2.msra.mxu0 %v704
        %784 = vmatprep.subr.mxu0 0.0
        %785 = vmatpush2.msra.mxu0 %v703
        %786 = vmatprep.subr.mxu0 0.0
        %787 = vmatpush2.msra.mxu0 %v702
        %788 = vmatprep.mubr.f32.mxu0 %v721
        %789 = vmatmul.mubr.f32.gmra.mxu0 %v720
        %v790 = vpop.f32.mrf.mxu0
        %v791 = vadd.f32 0.0, %v790
        %v792 = vpop.f32.mrf.mxu0
        %793 = vdwg.mxu0
        %v794 = vadd.f32 %v684, %v791
        %s795 = scalar_lea.vmem %s4, 512
        %v796 = vld [vmem:[%s795] sm:$0xff]
        %v797 = vld [vmem:[%s795 + $0x8] sm:$0xff]
        %v798 = vld [vmem:[%s795 + $0x10] sm:$0xff]
        %v799 = vld [vmem:[%s795 + $0x18] sm:$0xff]
        %v800 = vld [vmem:[%s795 + $0x20] sm:$0xff]
        %v801 = vld [vmem:[%s795 + $0x28] sm:$0xff]
        %v802 = vld [vmem:[%s795 + $0x30] sm:$0xff]
        %v803 = vld [vmem:[%s795 + $0x38] sm:$0xff]
        %v804 = vld [vmem:[%s795 + $0x40] sm:$0xff]
        %v805 = vld [vmem:[%s795 + $0x48] sm:$0xff]
        %v806 = vld [vmem:[%s795 + $0x50] sm:$0xff]
        %v807 = vld [vmem:[%s795 + $0x58] sm:$0xff]
        %v808 = vld [vmem:[%s795 + $0x60] sm:$0xff]
        %v809 = vld [vmem:[%s795 + $0x68] sm:$0xff]
        %v810 = vld [vmem:[%s795 + $0x70] sm:$0xff]
        %v811 = vld [vmem:[%s795 + $0x78] sm:$0xff]
        %v812 = vld [vmem:[%s795 + $0x80] sm:$0xff]
        %v813 = vld [vmem:[%s795 + $0x88] sm:$0xff]
        %v814 = vld [vmem:[%s795 + $0x90] sm:$0xff]
        %v815 = vld [vmem:[%s795 + $0x98] sm:$0xff]
        %v816 = vld [vmem:[%s795 + $0xa0] sm:$0xff]
        %v817 = vld [vmem:[%s795 + $0xa8] sm:$0xff]
        %v818 = vld [vmem:[%s795 + $0xb0] sm:$0xff]
        %v819 = vld [vmem:[%s795 + $0xb8] sm:$0xff]
        %v820 = vld [vmem:[%s795 + $0xc0] sm:$0xff]
        %v821 = vld [vmem:[%s795 + $0xc8] sm:$0xff]
        %v822 = vld [vmem:[%s795 + $0xd0] sm:$0xff]
        %v823 = vld [vmem:[%s795 + $0xd8] sm:$0xff]
        %v824 = vld [vmem:[%s795 + $0xe0] sm:$0xff]
        %v825 = vld [vmem:[%s795 + $0xe8] sm:$0xff]
        %v826 = vld [vmem:[%s795 + $0xf0] sm:$0xff]
        %v827 = vld [vmem:[%s795 + $0xf8] sm:$0xff]
        %v828 = vrot.slane %v577, 2
        %v829 = vrot.slane %v579, 2
        %832 = vmatprep.subr.mxu0 0.0
        %833 = vmatpush1.msra.mxu0 %v811
        %834 = vmatprep.subr.mxu0 0.0
        %835 = vmatpush1.msra.mxu0 %v810
        %836 = vmatprep.subr.mxu0 0.0
        %837 = vmatpush1.msra.mxu0 %v809
        %838 = vmatprep.subr.mxu0 0.0
        %839 = vmatpush1.msra.mxu0 %v808
        %840 = vmatprep.subr.mxu0 0.0
        %841 = vmatpush1.msra.mxu0 %v807
        %842 = vmatprep.subr.mxu0 0.0
        %843 = vmatpush1.msra.mxu0 %v806
        %844 = vmatprep.subr.mxu0 0.0
        %845 = vmatpush1.msra.mxu0 %v805
        %846 = vmatprep.subr.mxu0 0.0
        %847 = vmatpush1.msra.mxu0 %v804
        %848 = vmatprep.subr.mxu0 0.0
        %849 = vmatpush1.msra.mxu0 %v803
        %850 = vmatprep.subr.mxu0 0.0
        %851 = vmatpush1.msra.mxu0 %v802
        %852 = vmatprep.subr.mxu0 0.0
        %853 = vmatpush1.msra.mxu0 %v801
        %854 = vmatprep.subr.mxu0 0.0
        %855 = vmatpush1.msra.mxu0 %v800
        %856 = vmatprep.subr.mxu0 0.0
        %857 = vmatpush1.msra.mxu0 %v799
        %858 = vmatprep.subr.mxu0 0.0
        %859 = vmatpush1.msra.mxu0 %v798
        %860 = vmatprep.subr.mxu0 0.0
        %861 = vmatpush1.msra.mxu0 %v797
        %862 = vmatprep.subr.mxu0 0.0
        %863 = vmatpush1.msra.mxu0 %v796
        %864 = vmatprep.subr.mxu0 0.0
        %865 = vmatpush2.msra.mxu0 %v827
        %866 = vmatprep.subr.mxu0 0.0
        %867 = vmatpush2.msra.mxu0 %v826
        %868 = vmatprep.subr.mxu0 0.0
        %869 = vmatpush2.msra.mxu0 %v825
        %870 = vmatprep.subr.mxu0 0.0
        %871 = vmatpush2.msra.mxu0 %v824
        %872 = vmatprep.subr.mxu0 0.0
        %873 = vmatpush2.msra.mxu0 %v823
        %874 = vmatprep.subr.mxu0 0.0
        %875 = vmatpush2.msra.mxu0 %v822
        %876 = vmatprep.subr.mxu0 0.0
        %877 = vmatpush2.msra.mxu0 %v821
        %878 = vmatprep.subr.mxu0 0.0
        %879 = vmatpush2.msra.mxu0 %v820
        %880 = vmatprep.subr.mxu0 0.0
        %881 = vmatpush2.msra.mxu0 %v819
        %882 = vmatprep.subr.mxu0 0.0
        %883 = vmatpush2.msra.mxu0 %v818
        %884 = vmatprep.subr.mxu0 0.0
        %885 = vmatpush2.msra.mxu0 %v817
        %886 = vmatprep.subr.mxu0 0.0
        %887 = vmatpush2.msra.mxu0 %v816
        %888 = vmatprep.subr.mxu0 0.0
        %889 = vmatpush2.msra.mxu0 %v815
        %890 = vmatprep.subr.mxu0 0.0
        %891 = vmatpush2.msra.mxu0 %v814
        %892 = vmatprep.subr.mxu0 0.0
        %893 = vmatpush2.msra.mxu0 %v813
        %894 = vmatprep.subr.mxu0 0.0
        %895 = vmatpush2.msra.mxu0 %v812
        %896 = vmatprep.mubr.f32.mxu0 %v829
        %897 = vmatmul.mubr.f32.gmra.mxu0 %v828
        %v898 = vpop.f32.mrf.mxu0
        %v899 = vadd.f32 0.0, %v898
        %v900 = vpop.f32.mrf.mxu0
        %901 = vdwg.mxu0
        %v902 = vadd.f32 %v794, %v899
        %vm903 = vcmask 16384
        %904 = vst.msk [vmem:[%s254] sm:$0x1] %vm903, %v902
        %s905 = sand.u32 %s164, 1
        %s906 = scalar_lea.sflag [#allocation3], %s905
        %s907 = sand.u32 %s164, 1
        %s908 = scalar_lea.vmem [#allocation2], %s907
        // Predicated region
        $region45: #{tpu_custom_call.1} parent=43 // pred_check
          %p909 = pneg %p174
        $region46: #{tpu_custom_call.1} parent=43 // pred_check_branch
          %911 = sbr.rel (%p909) target = $region48
        $region47: #{tpu_custom_call.1} parent=43 // pred_region
          %s913 = ssub.s32 16, 16
          %914 = vsyncadd %s906, %s913
          %s915 = smul.addr %s20, 16
          %s916 = scalar_lea.hbm %s6, %s915
          %s918 = sshll.u32 %s908, 4
          %s919 = int_to_ptr.vmem [resolvable:$true] %s918
          %921 = dma.vmem_to_hbm [thread:$0]  %s919, 16, %s916, %s906
        $region48: #{tpu_custom_call.1} parent=43 // pred_fallthru
          _
      $region44: #{tpu_custom_call.1} parent=5 // pred_fallthru
        _
      %p922 = scmp.le.s32.totalorder 2, %s15
      // Predicated region
      $region49: #{tpu_custom_call.1} parent=5 // pred_check
        %p923 = pneg %p922
      $region50: #{tpu_custom_call.1} parent=5 // pred_check_branch
        %925 = sbr.rel (%p923) target = $region52
      $region51: #{tpu_custom_call.1} parent=5 // pred_region
        %s926 = ssub.s32 %s15, 2
        // Predicated region
        $region53: #{tpu_custom_call.1} parent=51 // pred_check
          %p927 = pneg %p180
        $region54: #{tpu_custom_call.1} parent=51 // pred_check_branch
          %929 = sbr.rel (%p927) target = $region56
        $region55: #{tpu_custom_call.1} parent=51 // pred_region
          %s930 = sand.u32 %s165, 1
          %s931 = scalar_lea.sflag [#allocation3], %s930
          %s932 = sand.u32 %s165, 1
          %s933 = scalar_lea.vmem [#allocation2], %s932
          %934 = dma.done %s931, 16
        $region56: #{tpu_custom_call.1} parent=51 // pred_fallthru
          _
      $region52: #{tpu_custom_call.1} parent=5 // pred_fallthru
        _
    $region6: #{tpu_custom_call.1} parent=1 // loop_footer
      %s19 = sadd.s32 1, %s15
    $region7: #{tpu_custom_call.1} parent=1 // loop_footer_branch
      %14 = sbr.rel target = $region3
    $region8: #{tpu_custom_call.1} parent=1 // loop_exit
      _
    %935 = vsyncpa [#allocation3], 1
    %s936 = scalar_lea.sflag [#allocation3], 1
    %937 = vsyncpa %s936, 1

</llo_original>
